<compile_context>
chip_gen: v7x
topology: tpu7x:2x2x1
jax: 0.10.0
libtpu: 0.0.40
codegen_flags: <defaults>
</compile_context>

<pallas_src>
import functools

import jax
import jax.numpy as jnp
from jax.experimental import pallas as pl
from jax.experimental.pallas import tpu as pltpu

IMAGE_SIZE = 28 * 28
H0, H1, H2, H3, H4, OUT = 128, 64, 10, 10, 10, 10
OUT_PAD = 128          # lane-dense output width (last dim multiple of 128)
NEG_BIG = -1e30        # pad-bias value; exp(NEG_BIG - m) underflows to 0


def _sigmoid(x):
    # sigmoid(x) = 0.5 * (1 + tanh(0.5 * x)) -> single EUP tanh, no divide.
    return 0.5 * (jnp.tanh(0.5 * x) + 1.0)


def model_f_kernel(x_ref, w0_ref, b0_ref, w1_ref, b1_ref, w2_ref, b2_ref,
                   w3_ref, b3_ref, w4_ref, b4_ref, w5_ref, b5_ref, o_ref,
                   *, act_dtype):
    # In-register cast of the f32 input tile to bf16 for the MXU.
    x = x_ref[...].astype(jnp.bfloat16)                       # (TM, 784)

    # fc0 + sigmoid (bf16 MXU, f32 accumulate; sigmoid in act_dtype)
    h = jnp.dot(x, w0_ref[...], preferred_element_type=jnp.float32) + b0_ref[...]
    h = _sigmoid(h.astype(act_dtype))                         # (TM, 128)

    # fc1 + sigmoid
    h = jnp.dot(h.astype(jnp.bfloat16), w1_ref[...],
                preferred_element_type=jnp.float32) + b1_ref[...]
    h = _sigmoid(h.astype(act_dtype))                         # (TM, 64)

    # fc2..fc4 + sigmoid (tiny; keep f32)
    h = h.astype(jnp.float32)
    h = _sigmoid(jnp.dot(h, w2_ref[...],
                         preferred_element_type=jnp.float32) + b2_ref[...])
    h = _sigmoid(jnp.dot(h, w3_ref[...],
                         preferred_element_type=jnp.float32) + b3_ref[...])
    h = _sigmoid(jnp.dot(h, w4_ref[...],
                         preferred_element_type=jnp.float32) + b4_ref[...])

    # fc5 padded to 128 output columns (pad weights = 0, pad bias = -1e30 so
    # the extra columns contribute exp(...) == 0) + log_softmax over last axis.
    logits = jnp.dot(h, w5_ref[...],
                     preferred_element_type=jnp.float32) + b5_ref[...]
    m = jnp.max(logits, axis=-1, keepdims=True)
    shifted = logits - m
    lse = jnp.log(jnp.sum(jnp.exp(shifted), axis=-1, keepdims=True))
    o_ref[...] = (shifted - lse).astype(o_ref.dtype)          # lane-dense bf16 store


def _round_up(n, m):
    return ((n + m - 1) // m) * m


def model_f_forward(x_nchw, params, *, tile_m=1024):
    B = x_nchw.shape[0]
    x = x_nchw.reshape(B, IMAGE_SIZE)          # f32; bf16 cast happens in-kernel

    # bf16 transcendentals only where the hardware has a bf16 VPU/EUP path.
    kind = jax.devices()[0].device_kind.lower()
    act_dtype = jnp.bfloat16 if ("v6" in kind or "v7" in kind) else jnp.float32

    # Batch tile: multiple of 16, large enough to amortize per-step overhead,
    # capped so the grid has >=2 steps when B allows (v7x 2-TC sharding).
    TM = min(tile_m, _round_up(pl.cdiv(B, 2), 16))
    TM = max(TM, 16)
    grid = (pl.cdiv(B, TM),)                   # partial tail block is masked

    operands = (
        x,
        params["w0"], params["b0"], params["w1"], params["b1"],
        params["w2"], params["b2"], params["w3"], params["b3"],
        params["w4"], params["b4"], params["w5p"], params["b5p"],
    )

    # x is tiled over the batch; parameters use constant index_maps so they
    # stay VMEM-resident across grid steps.
    in_specs = [pl.BlockSpec((TM, IMAGE_SIZE), lambda i: (i, 0))]
    in_specs += [pl.BlockSpec(a.shape, lambda i: (0, 0)) for a in operands[1:]]

    out = pl.pallas_call(
        functools.partial(model_f_kernel, act_dtype=act_dtype),
        out_shape=jax.ShapeDtypeStruct((B, OUT_PAD), jnp.bfloat16),
        grid=grid,
        in_specs=in_specs,
        out_specs=pl.BlockSpec((TM, OUT_PAD), lambda i: (i, 0)),
        compiler_params=pltpu.CompilerParams(
            dimension_semantics=("parallel",),
            vmem_limit_bytes=32 * 1024 * 1024,
        ),
    )(*operands)

    # Drop the lane padding and give the caller f32 (matches the PyTorch module).
    return out[:, :OUT].astype(jnp.float32)


def init_params(key):
    # Deterministic init mimicking nn.Linear defaults: uniform(+/- 1/sqrt(fan_in)).
    ks = jax.random.split(key, 12)

    def lin(kw, kb, fan_in, fan_out, w_dtype=jnp.float32):
        bound = 1.0 / jnp.sqrt(jnp.float32(fan_in))
        w = jax.random.uniform(kw, (fan_in, fan_out), jnp.float32, -bound, bound)
        b = jax.random.uniform(kb, (1, fan_out), jnp.float32, -bound, bound)
        return w.astype(w_dtype), b

    w0, b0 = lin(ks[0], ks[1], IMAGE_SIZE, H0, jnp.bfloat16)
    w1, b1 = lin(ks[2], ks[3], H0, H1, jnp.bfloat16)
    w2, b2 = lin(ks[4], ks[5], H1, H2)
    w3, b3 = lin(ks[6], ks[7], H2, H3)
    w4, b4 = lin(ks[8], ks[9], H3, H4)
    w5, b5 = lin(ks[10], ks[11], H4, OUT)

    # Lane-dense fc5: zero-pad weights to 128 output columns; pad bias with a
    # huge negative so the extra columns drop out of log_softmax.
    w5p = jnp.zeros((H4, OUT_PAD), jnp.float32).at[:, :OUT].set(w5)
    b5p = jnp.full((1, OUT_PAD), NEG_BIG, jnp.float32).at[:, :OUT].set(b5)

    return {
        "w0": w0, "b0": b0, "w1": w1, "b1": b1,
        "w2": w2, "b2": b2, "w3": w3, "b3": b3,
        "w4": w4, "b4": b4, "w5p": w5p, "b5p": b5p,
        # keep the unpadded fc5 around for the pure-JAX reference
        "w5": w5, "b5": b5,
    }


def _reference(x_nchw, params):
    # Pure-JAX f32 reference of Model_F.forward (for a sanity check).
    x = x_nchw.reshape(x_nchw.shape[0], IMAGE_SIZE).astype(jnp.float32)
    h = jax.nn.sigmoid(x @ params["w0"].astype(jnp.float32) + params["b0"])
    h = jax.nn.sigmoid(h @ params["w1"].astype(jnp.float32) + params["b1"])
    h = jax.nn.sigmoid(h @ params["w2"] + params["b2"])
    h = jax.nn.sigmoid(h @ params["w3"] + params["b3"])
    h = jax.nn.sigmoid(h @ params["w4"] + params["b4"])
    logits = h @ params["w5"] + params["b5"]
    return jax.nn.log_softmax(logits, axis=-1)


if __name__ == "__main__":
    key = jax.random.PRNGKey(0)
    k_x, k_p = jax.random.split(key)

    B = 8
    x = jax.random.normal(k_x, (B, 1, 28, 28), jnp.float32)   # NCHW, like MNIST
    params = init_params(k_p)

    out = jax.block_until_ready(model_f_forward(x, params))

    assert out.shape == (B, OUT) and out.dtype == jnp.float32
    assert bool(jnp.all(jnp.isfinite(out)))
    # log_softmax rows should (approximately) exp-sum to 1 (bf16 output slab)
    row_sums = jnp.sum(jnp.exp(out), axis=-1)
    assert jnp.allclose(row_sums, jnp.ones_like(row_sums), atol=1e-2)
    # compare against the f32 pure-JAX reference (bf16 matmuls/activations -> loose tol)
    ref = _reference(x, params)
    assert jnp.allclose(out, ref, atol=1e-1, rtol=1e-1)

    print("KERNEL_OK")
</pallas_src>

<mosaic_0001>
module attributes {stable_mosaic.version = 11 : i64} {
  func.func @model_f_kernel(%arg0: i32, %arg1: memref<16x784xf32, #tpu.memory_space<vmem>>, %arg2: memref<784x128xbf16, #tpu.memory_space<vmem>>, %arg3: memref<1x128xf32, #tpu.memory_space<vmem>>, %arg4: memref<128x64xbf16, #tpu.memory_space<vmem>>, %arg5: memref<1x64xf32, #tpu.memory_space<vmem>>, %arg6: memref<64x10xf32, #tpu.memory_space<vmem>>, %arg7: memref<1x10xf32, #tpu.memory_space<vmem>>, %arg8: memref<10x10xf32, #tpu.memory_space<vmem>>, %arg9: memref<1x10xf32, #tpu.memory_space<vmem>>, %arg10: memref<10x10xf32, #tpu.memory_space<vmem>>, %arg11: memref<1x10xf32, #tpu.memory_space<vmem>>, %arg12: memref<10x128xf32, #tpu.memory_space<vmem>>, %arg13: memref<1x128xf32, #tpu.memory_space<vmem>>, %arg14: memref<16x128xbf16, #tpu.memory_space<vmem>>) attributes {dimension_semantics = [#tpu.dimension_semantics<parallel>], iteration_bounds = array<i64: 1>, scalar_prefetch = 0 : i64, scratch_operands = 0 : i64, tpu.core_type = #tpu.core_type<tc>, window_params = [{transform_indices = @transform_0, window_bounds = array<i64: 16, 784>}, {pipeline_mode = #tpu.pipeline_mode<synchronous>, transform_indices = @transform_1, window_bounds = array<i64: 784, 128>}, {pipeline_mode = #tpu.pipeline_mode<synchronous>, transform_indices = @transform_2, window_bounds = array<i64: 1, 128>}, {pipeline_mode = #tpu.pipeline_mode<synchronous>, transform_indices = @transform_3, window_bounds = array<i64: 128, 64>}, {pipeline_mode = #tpu.pipeline_mode<synchronous>, transform_indices = @transform_4, window_bounds = array<i64: 1, 64>}, {pipeline_mode = #tpu.pipeline_mode<synchronous>, transform_indices = @transform_5, window_bounds = array<i64: 64, 10>}, {pipeline_mode = #tpu.pipeline_mode<synchronous>, transform_indices = @transform_6, window_bounds = array<i64: 1, 10>}, {pipeline_mode = #tpu.pipeline_mode<synchronous>, transform_indices = @transform_7, window_bounds = array<i64: 10, 10>}, {pipeline_mode = #tpu.pipeline_mode<synchronous>, transform_indices = @transform_8, window_bounds = array<i64: 1, 10>}, {pipeline_mode = #tpu.pipeline_mode<synchronous>, transform_indices = @transform_9, window_bounds = array<i64: 10, 10>}, {pipeline_mode = #tpu.pipeline_mode<synchronous>, transform_indices = @transform_10, window_bounds = array<i64: 1, 10>}, {pipeline_mode = #tpu.pipeline_mode<synchronous>, transform_indices = @transform_11, window_bounds = array<i64: 10, 128>}, {pipeline_mode = #tpu.pipeline_mode<synchronous>, transform_indices = @transform_12, window_bounds = array<i64: 1, 128>}, {transform_indices = @transform_13, window_bounds = array<i64: 16, 128>}]} {
    %c0 = arith.constant 0 : index
    %c0_0 = arith.constant 0 : index
    %0 = vector.load %arg1[%c0, %c0_0] : memref<16x784xf32, #tpu.memory_space<vmem>>, vector<16x784xf32>
    %1 = arith.truncf %0 : vector<16x784xf32> to vector<16x784xbf16>
    %c0_1 = arith.constant 0 : index
    %c0_2 = arith.constant 0 : index
    %2 = vector.load %arg2[%c0_1, %c0_2] : memref<784x128xbf16, #tpu.memory_space<vmem>>, vector<784x128xbf16>
    %cst = arith.constant dense<0.000000e+00> : vector<16x128xf32>
    %3 = tpu.matmul %1, %2, %cst {dimension_numbers = #tpu.dot_dimension_numbers<[1], [0], [0], [1], [0, 0, 1, 1], [], []>} : vector<16x784xbf16>, vector<784x128xbf16>, vector<16x128xf32> -> vector<16x128xf32>
    %c0_3 = arith.constant 0 : index
    %c0_4 = arith.constant 0 : index
    %4 = vector.load %arg3[%c0_3, %c0_4] : memref<1x128xf32, #tpu.memory_space<vmem>>, vector<1x128xf32>
    %5 = vector.broadcast %4 : vector<1x128xf32> to vector<16x128xf32>
    %6 = arith.addf %3, %5 : vector<16x128xf32>
    %cst_5 = arith.constant 5.000000e-01 : f32
    %7 = vector.broadcast %cst_5 : f32 to vector<16x128xf32>
    %8 = arith.mulf %7, %6 : vector<16x128xf32>
    %9 = math.tanh %8 : vector<16x128xf32>
    %cst_6 = arith.constant 1.000000e+00 : f32
    %10 = vector.broadcast %cst_6 : f32 to vector<16x128xf32>
    %11 = arith.addf %9, %10 : vector<16x128xf32>
    %cst_7 = arith.constant 5.000000e-01 : f32
    %12 = vector.broadcast %cst_7 : f32 to vector<16x128xf32>
    %13 = arith.mulf %12, %11 : vector<16x128xf32>
    %14 = arith.truncf %13 : vector<16x128xf32> to vector<16x128xbf16>
    %c0_8 = arith.constant 0 : index
    %c0_9 = arith.constant 0 : index
    %15 = vector.load %arg4[%c0_8, %c0_9] : memref<128x64xbf16, #tpu.memory_space<vmem>>, vector<128x64xbf16>
    %cst_10 = arith.constant dense<0.000000e+00> : vector<16x64xf32>
    %16 = tpu.matmul %14, %15, %cst_10 {dimension_numbers = #tpu.dot_dimension_numbers<[1], [0], [0], [1], [0, 0, 1, 1], [], []>} : vector<16x128xbf16>, vector<128x64xbf16>, vector<16x64xf32> -> vector<16x64xf32>
    %c0_11 = arith.constant 0 : index
    %c0_12 = arith.constant 0 : index
    %17 = vector.load %arg5[%c0_11, %c0_12] : memref<1x64xf32, #tpu.memory_space<vmem>>, vector<1x64xf32>
    %18 = vector.broadcast %17 : vector<1x64xf32> to vector<16x64xf32>
    %19 = arith.addf %16, %18 : vector<16x64xf32>
    %cst_13 = arith.constant 5.000000e-01 : f32
    %20 = vector.broadcast %cst_13 : f32 to vector<16x64xf32>
    %21 = arith.mulf %20, %19 : vector<16x64xf32>
    %22 = math.tanh %21 : vector<16x64xf32>
    %cst_14 = arith.constant 1.000000e+00 : f32
    %23 = vector.broadcast %cst_14 : f32 to vector<16x64xf32>
    %24 = arith.addf %22, %23 : vector<16x64xf32>
    %cst_15 = arith.constant 5.000000e-01 : f32
    %25 = vector.broadcast %cst_15 : f32 to vector<16x64xf32>
    %26 = arith.mulf %25, %24 : vector<16x64xf32>
    %c0_16 = arith.constant 0 : index
    %c0_17 = arith.constant 0 : index
    %27 = vector.load %arg6[%c0_16, %c0_17] : memref<64x10xf32, #tpu.memory_space<vmem>>, vector<64x10xf32>
    %cst_18 = arith.constant dense<0.000000e+00> : vector<16x10xf32>
    %28 = tpu.matmul %26, %27, %cst_18 {dimension_numbers = #tpu.dot_dimension_numbers<[1], [0], [0], [1], [0, 0, 1, 1], [], []>} : vector<16x64xf32>, vector<64x10xf32>, vector<16x10xf32> -> vector<16x10xf32>
    %c0_19 = arith.constant 0 : index
    %c0_20 = arith.constant 0 : index
    %29 = vector.load %arg7[%c0_19, %c0_20] : memref<1x10xf32, #tpu.memory_space<vmem>>, vector<1x10xf32>
    %30 = vector.broadcast %29 : vector<1x10xf32> to vector<16x10xf32>
    %31 = arith.addf %28, %30 : vector<16x10xf32>
    %cst_21 = arith.constant 5.000000e-01 : f32
    %32 = vector.broadcast %cst_21 : f32 to vector<16x10xf32>
    %33 = arith.mulf %32, %31 : vector<16x10xf32>
    %34 = math.tanh %33 : vector<16x10xf32>
    %cst_22 = arith.constant 1.000000e+00 : f32
    %35 = vector.broadcast %cst_22 : f32 to vector<16x10xf32>
    %36 = arith.addf %34, %35 : vector<16x10xf32>
    %cst_23 = arith.constant 5.000000e-01 : f32
    %37 = vector.broadcast %cst_23 : f32 to vector<16x10xf32>
    %38 = arith.mulf %37, %36 : vector<16x10xf32>
    %c0_24 = arith.constant 0 : index
    %c0_25 = arith.constant 0 : index
    %39 = vector.load %arg8[%c0_24, %c0_25] : memref<10x10xf32, #tpu.memory_space<vmem>>, vector<10x10xf32>
    %cst_26 = arith.constant dense<0.000000e+00> : vector<16x10xf32>
    %40 = tpu.matmul %38, %39, %cst_26 {dimension_numbers = #tpu.dot_dimension_numbers<[1], [0], [0], [1], [0, 0, 1, 1], [], []>} : vector<16x10xf32>, vector<10x10xf32>, vector<16x10xf32> -> vector<16x10xf32>
    %c0_27 = arith.constant 0 : index
    %c0_28 = arith.constant 0 : index
    %41 = vector.load %arg9[%c0_27, %c0_28] : memref<1x10xf32, #tpu.memory_space<vmem>>, vector<1x10xf32>
    %42 = vector.broadcast %41 : vector<1x10xf32> to vector<16x10xf32>
    %43 = arith.addf %40, %42 : vector<16x10xf32>
    %cst_29 = arith.constant 5.000000e-01 : f32
    %44 = vector.broadcast %cst_29 : f32 to vector<16x10xf32>
    %45 = arith.mulf %44, %43 : vector<16x10xf32>
    %46 = math.tanh %45 : vector<16x10xf32>
    %cst_30 = arith.constant 1.000000e+00 : f32
    %47 = vector.broadcast %cst_30 : f32 to vector<16x10xf32>
    %48 = arith.addf %46, %47 : vector<16x10xf32>
    %cst_31 = arith.constant 5.000000e-01 : f32
    %49 = vector.broadcast %cst_31 : f32 to vector<16x10xf32>
    %50 = arith.mulf %49, %48 : vector<16x10xf32>
    %c0_32 = arith.constant 0 : index
    %c0_33 = arith.constant 0 : index
    %51 = vector.load %arg10[%c0_32, %c0_33] : memref<10x10xf32, #tpu.memory_space<vmem>>, vector<10x10xf32>
    %cst_34 = arith.constant dense<0.000000e+00> : vector<16x10xf32>
    %52 = tpu.matmul %50, %51, %cst_34 {dimension_numbers = #tpu.dot_dimension_numbers<[1], [0], [0], [1], [0, 0, 1, 1], [], []>} : vector<16x10xf32>, vector<10x10xf32>, vector<16x10xf32> -> vector<16x10xf32>
    %c0_35 = arith.constant 0 : index
    %c0_36 = arith.constant 0 : index
    %53 = vector.load %arg11[%c0_35, %c0_36] : memref<1x10xf32, #tpu.memory_space<vmem>>, vector<1x10xf32>
    %54 = vector.broadcast %53 : vector<1x10xf32> to vector<16x10xf32>
    %55 = arith.addf %52, %54 : vector<16x10xf32>
    %cst_37 = arith.constant 5.000000e-01 : f32
    %56 = vector.broadcast %cst_37 : f32 to vector<16x10xf32>
    %57 = arith.mulf %56, %55 : vector<16x10xf32>
    %58 = math.tanh %57 : vector<16x10xf32>
    %cst_38 = arith.constant 1.000000e+00 : f32
    %59 = vector.broadcast %cst_38 : f32 to vector<16x10xf32>
    %60 = arith.addf %58, %59 : vector<16x10xf32>
    %cst_39 = arith.constant 5.000000e-01 : f32
    %61 = vector.broadcast %cst_39 : f32 to vector<16x10xf32>
    %62 = arith.mulf %61, %60 : vector<16x10xf32>
    %c0_40 = arith.constant 0 : index
    %c0_41 = arith.constant 0 : index
    %63 = vector.load %arg12[%c0_40, %c0_41] : memref<10x128xf32, #tpu.memory_space<vmem>>, vector<10x128xf32>
    %cst_42 = arith.constant dense<0.000000e+00> : vector<16x128xf32>
    %64 = tpu.matmul %62, %63, %cst_42 {dimension_numbers = #tpu.dot_dimension_numbers<[1], [0], [0], [1], [0, 0, 1, 1], [], []>} : vector<16x10xf32>, vector<10x128xf32>, vector<16x128xf32> -> vector<16x128xf32>
    %c0_43 = arith.constant 0 : index
    %c0_44 = arith.constant 0 : index
    %65 = vector.load %arg13[%c0_43, %c0_44] : memref<1x128xf32, #tpu.memory_space<vmem>>, vector<1x128xf32>
    %66 = vector.broadcast %65 : vector<1x128xf32> to vector<16x128xf32>
    %67 = arith.addf %64, %66 : vector<16x128xf32>
    %cst_45 = arith.constant dense<0xFF800000> : vector<16xf32>
    %68 = vector.multi_reduction <maximumf>, %67, %cst_45 [1] : vector<16x128xf32> to vector<16xf32>
    %69 = vector.shape_cast %68 : vector<16xf32> to vector<16x1xf32>
    %70 = vector.broadcast %69 : vector<16x1xf32> to vector<16x128xf32>
    %71 = arith.subf %67, %70 : vector<16x128xf32>
    %72 = math.exp %71 : vector<16x128xf32>
    %cst_46 = arith.constant dense<0.000000e+00> : vector<16xf32>
    %73 = vector.multi_reduction <add>, %72, %cst_46 [1] : vector<16x128xf32> to vector<16xf32>
    %74 = vector.shape_cast %73 : vector<16xf32> to vector<16x1xf32>
    %75 = math.log %74 : vector<16x1xf32>
    %76 = vector.broadcast %75 : vector<16x1xf32> to vector<16x128xf32>
    %77 = arith.subf %71, %76 : vector<16x128xf32>
    %78 = arith.truncf %77 : vector<16x128xf32> to vector<16x128xbf16>
    %c0_47 = arith.constant 0 : index
    %c0_48 = arith.constant 0 : index
    %79 = vector.load %arg14[%c0_47, %c0_48] : memref<16x128xbf16, #tpu.memory_space<vmem>>, vector<16x128xbf16>
    tpu.vector_store %arg14[%c0_47, %c0_48], %78 {strides = array<i32>} : memref<16x128xbf16, #tpu.memory_space<vmem>>, vector<16x128xbf16>,
    return
  }
  func.func @transform_0(%arg0: i32) -> (i32, i32) {
    %c0_i32 = arith.constant 0 : i32
    %c0_i32_0 = arith.constant 0 : i32
    return %arg0, %c0_i32 : i32, i32
  }
  func.func @transform_1(%arg0: i32) -> (i32, i32) {
    %c0_i32 = arith.constant 0 : i32
    %c0_i32_0 = arith.constant 0 : i32
    %c0_i32_1 = arith.constant 0 : i32
    return %c0_i32, %c0_i32_0 : i32, i32
  }
  func.func @transform_2(%arg0: i32) -> (i32, i32) {
    %c0_i32 = arith.constant 0 : i32
    %c0_i32_0 = arith.constant 0 : i32
    %c0_i32_1 = arith.constant 0 : i32
    return %c0_i32, %c0_i32_0 : i32, i32
  }
  func.func @transform_3(%arg0: i32) -> (i32, i32) {
    %c0_i32 = arith.constant 0 : i32
    %c0_i32_0 = arith.constant 0 : i32
    %c0_i32_1 = arith.constant 0 : i32
    return %c0_i32, %c0_i32_0 : i32, i32
  }
  func.func @transform_4(%arg0: i32) -> (i32, i32) {
    %c0_i32 = arith.constant 0 : i32
    %c0_i32_0 = arith.constant 0 : i32
    %c0_i32_1 = arith.constant 0 : i32
    return %c0_i32, %c0_i32_0 : i32, i32
  }
  func.func @transform_5(%arg0: i32) -> (i32, i32) {
    %c0_i32 = arith.constant 0 : i32
    %c0_i32_0 = arith.constant 0 : i32
    %c0_i32_1 = arith.constant 0 : i32
    return %c0_i32, %c0_i32_0 : i32, i32
  }
  func.func @transform_6(%arg0: i32) -> (i32, i32) {
    %c0_i32 = arith.constant 0 : i32
    %c0_i32_0 = arith.constant 0 : i32
    %c0_i32_1 = arith.constant 0 : i32
    return %c0_i32, %c0_i32_0 : i32, i32
  }
  func.func @transform_7(%arg0: i32) -> (i32, i32) {
    %c0_i32 = arith.constant 0 : i32
    %c0_i32_0 = arith.constant 0 : i32
    %c0_i32_1 = arith.constant 0 : i32
    return %c0_i32, %c0_i32_0 : i32, i32
  }
  func.func @transform_8(%arg0: i32) -> (i32, i32) {
    %c0_i32 = arith.constant 0 : i32
    %c0_i32_0 = arith.constant 0 : i32
    %c0_i32_1 = arith.constant 0 : i32
    return %c0_i32, %c0_i32_0 : i32, i32
  }
  func.func @transform_9(%arg0: i32) -> (i32, i32) {
    %c0_i32 = arith.constant 0 : i32
    %c0_i32_0 = arith.constant 0 : i32
    %c0_i32_1 = arith.constant 0 : i32
    return %c0_i32, %c0_i32_0 : i32, i32
  }
  func.func @transform_10(%arg0: i32) -> (i32, i32) {
    %c0_i32 = arith.constant 0 : i32
    %c0_i32_0 = arith.constant 0 : i32
    %c0_i32_1 = arith.constant 0 : i32
    return %c0_i32, %c0_i32_0 : i32, i32
  }
  func.func @transform_11(%arg0: i32) -> (i32, i32) {
    %c0_i32 = arith.constant 0 : i32
    %c0_i32_0 = arith.constant 0 : i32
    %c0_i32_1 = arith.constant 0 : i32
    return %c0_i32, %c0_i32_0 : i32, i32
  }
  func.func @transform_12(%arg0: i32) -> (i32, i32) {
    %c0_i32 = arith.constant 0 : i32
    %c0_i32_0 = arith.constant 0 : i32
    %c0_i32_1 = arith.constant 0 : i32
    return %c0_i32, %c0_i32_0 : i32, i32
  }
  func.func @transform_13(%arg0: i32) -> (i32, i32) {
    %c0_i32 = arith.constant 0 : i32
    %c0_i32_0 = arith.constant 0 : i32
    return %arg0, %c0_i32 : i32, i32
  }
}

</mosaic_0001>

<llo_original>
// kernel: tpu_custom_call.1
$region0: #{tpu_custom_call.1}
  #allocation0 [shape = 'u32[]', space=smem, size = 0x4, offset = 0x4, fixed_abs, tag = 'smem constant byte address 0x4 - core index']
  #allocation1 [shape = 'u32[144,128]{1,0:T(1,128)}', space=vmem, size = 0x12000, scoped, tag = 'internal scratch']
  %s0 = inlined_call_operand.vmem [shape: f32[8,784], index: 0, kind: input, shape index: {}]
  %s1 = inlined_call_operand.hbm [shape: bf16[784,128], index: 1, kind: input, shape index: {}]
  %s2 = inlined_call_operand.vmem [shape: f32[1,128], index: 2, kind: input, shape index: {}]
  %s3 = inlined_call_operand.vmem [shape: bf16[128,64], index: 3, kind: input, shape index: {}]
  %s4 = inlined_call_operand.vmem [shape: f32[1,64], index: 4, kind: input, shape index: {}]
  %s5 = inlined_call_operand.vmem [shape: f32[64,10], index: 5, kind: input, shape index: {}]
  %s6 = inlined_call_operand.vmem [shape: f32[1,10], index: 6, kind: input, shape index: {}]
  %s7 = inlined_call_operand.vmem [shape: f32[10,10], index: 7, kind: input, shape index: {}]
  %s8 = inlined_call_operand.vmem [shape: f32[1,10], index: 8, kind: input, shape index: {}]
  %s9 = inlined_call_operand.vmem [shape: f32[10,10], index: 9, kind: input, shape index: {}]
  %s10 = inlined_call_operand.vmem [shape: f32[1,10], index: 10, kind: input, shape index: {}]
  %s11 = inlined_call_operand.vmem [shape: f32[10,128], index: 11, kind: input, shape index: {}]
  %s12 = inlined_call_operand.vmem [shape: f32[1,128], index: 12, kind: input, shape index: {}]
  %s13 = inlined_call_operand.hbm [shape: bf16[8,128], index: 13, kind: output, shape index: {}]
  %s14 = sld [smem:[#allocation0]]
  $region66: #{tpu_custom_call.1} parent=0
    _
  %s16 = ssub.s32 1, %s14
  %s17 = scalar_select 0, %s16, %s14
  $region1: #{tpu_custom_call.1} parent=0
    #allocation2 [shape = 'u8[200704]{0}', space=vmem, size = 0x31000, scoped, tag = 'input window, operand 1, single buffered']
    #allocation3 [shape = 's32[1]{0}', space=sflag, size = 0x4, scoped, tag = 'scoped memory for tpu_custom_call.1']
    #allocation4 [shape = 's32[1]{0}', space=sflag, size = 0x4, scoped, tag = 'scoped memory for tpu_custom_call.1']
    #allocation5 [shape = 'u8[4096]{0}', space=vmem, size = 0x1000, scoped, tag = 'output window, operand 0, single buffered']
    %18 = vsyncpa [#allocation3], 0
    %19 = vsyncpa [#allocation4], 0
    // Predicated region
    $region2: #{tpu_custom_call.1} parent=1 // pred_check
      _
    $region3: #{tpu_custom_call.1} parent=1 // pred_check_branch
      %21 = sbr.rel (0) target = $region5
    $region4: #{tpu_custom_call.1} parent=1 // pred_region
      _
    $region5: #{tpu_custom_call.1} parent=1 // pred_fallthru
      _
    // Predicated region
    $region6: #{tpu_custom_call.1} parent=1 // pred_check
      _
    $region7: #{tpu_custom_call.1} parent=1 // pred_check_branch
      %23 = sbr.rel (0) target = $region9
    $region8: #{tpu_custom_call.1} parent=1 // pred_region
      %s25 = ssub.s32 6272, 6272
      %26 = vsyncadd [#allocation3], %s25
      %s27 = sshll.u32 [#allocation2], 4
      %s28 = int_to_ptr.vmem [resolvable:$true] %s27
      %33 = dma.hbm_to_vmem [thread:$0]  %s1, 6272, %s28, [#allocation3], 64, 64, 4
    $region9: #{tpu_custom_call.1} parent=1 // pred_fallthru
      _
    // Predicated region
    $region10: #{tpu_custom_call.1} parent=1 // pred_check
      _
    $region11: #{tpu_custom_call.1} parent=1 // pred_check_branch
      %35 = sbr.rel (0) target = $region13
    $region12: #{tpu_custom_call.1} parent=1 // pred_region
      _
    $region13: #{tpu_custom_call.1} parent=1 // pred_fallthru
      _
    // Predicated region
    $region14: #{tpu_custom_call.1} parent=1 // pred_check
      _
    $region15: #{tpu_custom_call.1} parent=1 // pred_check_branch
      %37 = sbr.rel (0) target = $region17
    $region16: #{tpu_custom_call.1} parent=1 // pred_region
      _
    $region17: #{tpu_custom_call.1} parent=1 // pred_fallthru
      _
    // Predicated region
    $region18: #{tpu_custom_call.1} parent=1 // pred_check
      _
    $region19: #{tpu_custom_call.1} parent=1 // pred_check_branch
      %39 = sbr.rel (0) target = $region21
    $region20: #{tpu_custom_call.1} parent=1 // pred_region
      _
    $region21: #{tpu_custom_call.1} parent=1 // pred_fallthru
      _
    // Predicated region
    $region22: #{tpu_custom_call.1} parent=1 // pred_check
      _
    $region23: #{tpu_custom_call.1} parent=1 // pred_check_branch
      %41 = sbr.rel (0) target = $region25
    $region24: #{tpu_custom_call.1} parent=1 // pred_region
      _
    $region25: #{tpu_custom_call.1} parent=1 // pred_fallthru
      _
    // Predicated region
    $region26: #{tpu_custom_call.1} parent=1 // pred_check
      _
    $region27: #{tpu_custom_call.1} parent=1 // pred_check_branch
      %43 = sbr.rel (0) target = $region29
    $region28: #{tpu_custom_call.1} parent=1 // pred_region
      _
    $region29: #{tpu_custom_call.1} parent=1 // pred_fallthru
      _
    // Predicated region
    $region30: #{tpu_custom_call.1} parent=1 // pred_check
      _
    $region31: #{tpu_custom_call.1} parent=1 // pred_check_branch
      %45 = sbr.rel (0) target = $region33
    $region32: #{tpu_custom_call.1} parent=1 // pred_region
      _
    $region33: #{tpu_custom_call.1} parent=1 // pred_fallthru
      _
    // Predicated region
    $region34: #{tpu_custom_call.1} parent=1 // pred_check
      _
    $region35: #{tpu_custom_call.1} parent=1 // pred_check_branch
      %47 = sbr.rel (0) target = $region37
    $region36: #{tpu_custom_call.1} parent=1 // pred_region
      _
    $region37: #{tpu_custom_call.1} parent=1 // pred_fallthru
      _
    // Predicated region
    $region38: #{tpu_custom_call.1} parent=1 // pred_check
      _
    $region39: #{tpu_custom_call.1} parent=1 // pred_check_branch
      %49 = sbr.rel (0) target = $region41
    $region40: #{tpu_custom_call.1} parent=1 // pred_region
      _
    $region41: #{tpu_custom_call.1} parent=1 // pred_fallthru
      _
    // Predicated region
    $region42: #{tpu_custom_call.1} parent=1 // pred_check
      _
    $region43: #{tpu_custom_call.1} parent=1 // pred_check_branch
      %51 = sbr.rel (0) target = $region45
    $region44: #{tpu_custom_call.1} parent=1 // pred_region
      _
    $region45: #{tpu_custom_call.1} parent=1 // pred_fallthru
      _
    // Predicated region
    $region46: #{tpu_custom_call.1} parent=1 // pred_check
      _
    $region47: #{tpu_custom_call.1} parent=1 // pred_check_branch
      %53 = sbr.rel (0) target = $region49
    $region48: #{tpu_custom_call.1} parent=1 // pred_region
      _
    $region49: #{tpu_custom_call.1} parent=1 // pred_fallthru
      _
    // Predicated region
    $region50: #{tpu_custom_call.1} parent=1 // pred_check
      _
    $region51: #{tpu_custom_call.1} parent=1 // pred_check_branch
      %55 = sbr.rel (0) target = $region53
    $region52: #{tpu_custom_call.1} parent=1 // pred_region
      _
    $region53: #{tpu_custom_call.1} parent=1 // pred_fallthru
      _
    // Predicated region
    $region54: #{tpu_custom_call.1} parent=1 // pred_check
      _
    $region55: #{tpu_custom_call.1} parent=1 // pred_check_branch
      %57 = sbr.rel (0) target = $region57
    $region56: #{tpu_custom_call.1} parent=1 // pred_region
      %58 = dma.done [#allocation3], 6272
    $region57: #{tpu_custom_call.1} parent=1 // pred_fallthru
      _
    %v60 = vld [vmem:[%s0] sm:$0xff]
    %v61 = vld [vmem:[%s0 + $0x8] sm:$0xff]
    %v62 = vld [vmem:[%s0 + $0x10] sm:$0xff]
    %v63 = vld [vmem:[%s0 + $0x18] sm:$0xff]
    %v64 = vld [vmem:[%s0 + $0x20] sm:$0xff]
    %v65 = vld [vmem:[%s0 + $0x28] sm:$0xff]
    %v66 = vld [vmem:[%s0 + $0x30] sm:$0xff]
    %v67 = vld [vmem:[%s0 + $0x38] sm:$0xff]
    %v68 = vld [vmem:[%s0 + $0x40] sm:$0xff]
    %v69 = vld [vmem:[%s0 + $0x48] sm:$0xff]
    %v70 = vld [vmem:[%s0 + $0x50] sm:$0xff]
    %v71 = vld [vmem:[%s0 + $0x58] sm:$0xff]
    %v72 = vld [vmem:[%s0 + $0x60] sm:$0xff]
    %v73 = vld [vmem:[%s0 + $0x68] sm:$0xff]
    %v74 = vpack.c.bf16 %v67, %v60
    %v75 = vpack.c.bf16 %v68, %v61
    %v76 = vpack.c.bf16 %v69, %v62
    %v77 = vpack.c.bf16 %v70, %v63
    %v78 = vpack.c.bf16 %v71, %v64
    %v79 = vpack.c.bf16 %v72, %v65
    %v80 = vpack.c.bf16 %v73, %v66
    %v81 = vld [vmem:[#allocation2] sm:$0xf]
    %v82 = vld [vmem:[#allocation2 + $0x4] sm:$0xf]
    %v83 = vld [vmem:[#allocation2 + $0x8] sm:$0xf]
    %v84 = vld [vmem:[#allocation2 + $0xc] sm:$0xf]
    %v85 = vld [vmem:[#allocation2 + $0x10] sm:$0xf]
    %v86 = vld [vmem:[#allocation2 + $0x14] sm:$0xf]
    %v87 = vld [vmem:[#allocation2 + $0x18] sm:$0xf]
    %v88 = vld [vmem:[#allocation2 + $0x1c] sm:$0xf]
    %v89 = vld [vmem:[#allocation2 + $0x20] sm:$0xf]
    %v90 = vld [vmem:[#allocation2 + $0x24] sm:$0xf]
    %v91 = vld [vmem:[#allocation2 + $0x28] sm:$0xf]
    %v92 = vld [vmem:[#allocation2 + $0x2c] sm:$0xf]
    %v93 = vld [vmem:[#allocation2 + $0x30] sm:$0xf]
    %v94 = vld [vmem:[#allocation2 + $0x34] sm:$0xf]
    %v95 = vld [vmem:[#allocation2 + $0x38] sm:$0xf]
    %v96 = vld [vmem:[#allocation2 + $0x3c] sm:$0xf]
    %v97 = vld [vmem:[#allocation2 + $0x40] sm:$0xf]
    %v98 = vld [vmem:[#allocation2 + $0x44] sm:$0xf]
    %v99 = vld [vmem:[#allocation2 + $0x48] sm:$0xf]
    %v100 = vld [vmem:[#allocation2 + $0x4c] sm:$0xf]
    %v101 = vld [vmem:[#allocation2 + $0x50] sm:$0xf]
    %v102 = vld [vmem:[#allocation2 + $0x54] sm:$0xf]
    %v103 = vld [vmem:[#allocation2 + $0x58] sm:$0xf]
    %v104 = vld [vmem:[#allocation2 + $0x5c] sm:$0xf]
    %v105 = vld [vmem:[#allocation2 + $0x60] sm:$0xf]
    %v106 = vld [vmem:[#allocation2 + $0x64] sm:$0xf]
    %v107 = vld [vmem:[#allocation2 + $0x68] sm:$0xf]
    %v108 = vld [vmem:[#allocation2 + $0x6c] sm:$0xf]
    %v109 = vld [vmem:[#allocation2 + $0x70] sm:$0xf]
    %v110 = vld [vmem:[#allocation2 + $0x74] sm:$0xf]
    %v111 = vld [vmem:[#allocation2 + $0x78] sm:$0xf]
    %v112 = vld [vmem:[#allocation2 + $0x7c] sm:$0xf]
    %v113 = vld [vmem:[#allocation2 + $0x80] sm:$0xf]
    %v114 = vld [vmem:[#allocation2 + $0x84] sm:$0xf]
    %v115 = vld [vmem:[#allocation2 + $0x88] sm:$0xf]
    %v116 = vld [vmem:[#allocation2 + $0x8c] sm:$0xf]
    %v117 = vld [vmem:[#allocation2 + $0x90] sm:$0xf]
    %v118 = vld [vmem:[#allocation2 + $0x94] sm:$0xf]
    %v119 = vld [vmem:[#allocation2 + $0x98] sm:$0xf]
    %v120 = vld [vmem:[#allocation2 + $0x9c] sm:$0xf]
    %v121 = vld [vmem:[#allocation2 + $0xa0] sm:$0xf]
    %v122 = vld [vmem:[#allocation2 + $0xa4] sm:$0xf]
    %v123 = vld [vmem:[#allocation2 + $0xa8] sm:$0xf]
    %v124 = vld [vmem:[#allocation2 + $0xac] sm:$0xf]
    %v125 = vld [vmem:[#allocation2 + $0xb0] sm:$0xf]
    %v126 = vld [vmem:[#allocation2 + $0xb4] sm:$0xf]
    %v127 = vld [vmem:[#allocation2 + $0xb8] sm:$0xf]
    %v128 = vld [vmem:[#allocation2 + $0xbc] sm:$0xf]
    %v129 = vld [vmem:[#allocation2 + $0xc0] sm:$0xf]
    %v130 = vld [vmem:[#allocation2 + $0xc4] sm:$0xf]
    %v131 = vld [vmem:[#allocation2 + $0xc8] sm:$0xf]
    %v132 = vld [vmem:[#allocation2 + $0xcc] sm:$0xf]
    %v133 = vld [vmem:[#allocation2 + $0xd0] sm:$0xf]
    %v134 = vld [vmem:[#allocation2 + $0xd4] sm:$0xf]
    %v135 = vld [vmem:[#allocation2 + $0xd8] sm:$0xf]
    %v136 = vld [vmem:[#allocation2 + $0xdc] sm:$0xf]
    %v137 = vld [vmem:[#allocation2 + $0xe0] sm:$0xf]
    %v138 = vld [vmem:[#allocation2 + $0xe4] sm:$0xf]
    %v139 = vld [vmem:[#allocation2 + $0xe8] sm:$0xf]
    %v140 = vld [vmem:[#allocation2 + $0xec] sm:$0xf]
    %v141 = vld [vmem:[#allocation2 + $0xf0] sm:$0xf]
    %v142 = vld [vmem:[#allocation2 + $0xf4] sm:$0xf]
    %v143 = vld [vmem:[#allocation2 + $0xf8] sm:$0xf]
    %v144 = vld [vmem:[#allocation2 + $0xfc] sm:$0xf]
    %v145 = vld [vmem:[#allocation2 + $0x100] sm:$0xf]
    %v146 = vld [vmem:[#allocation2 + $0x104] sm:$0xf]
    %v147 = vld [vmem:[#allocation2 + $0x108] sm:$0xf]
    %v148 = vld [vmem:[#allocation2 + $0x10c] sm:$0xf]
    %v149 = vld [vmem:[#allocation2 + $0x110] sm:$0xf]
    %v150 = vld [vmem:[#allocation2 + $0x114] sm:$0xf]
    %v151 = vld [vmem:[#allocation2 + $0x118] sm:$0xf]
    %v152 = vld [vmem:[#allocation2 + $0x11c] sm:$0xf]
    %v153 = vld [vmem:[#allocation2 + $0x120] sm:$0xf]
    %v154 = vld [vmem:[#allocation2 + $0x124] sm:$0xf]
    %v155 = vld [vmem:[#allocation2 + $0x128] sm:$0xf]
    %v156 = vld [vmem:[#allocation2 + $0x12c] sm:$0xf]
    %v157 = vld [vmem:[#allocation2 + $0x130] sm:$0xf]
    %v158 = vld [vmem:[#allocation2 + $0x134] sm:$0xf]
    %v159 = vld [vmem:[#allocation2 + $0x138] sm:$0xf]
    %v160 = vld [vmem:[#allocation2 + $0x13c] sm:$0xf]
    %v161 = vld [vmem:[#allocation2 + $0x140] sm:$0xf]
    %v162 = vld [vmem:[#allocation2 + $0x144] sm:$0xf]
    %v163 = vld [vmem:[#allocation2 + $0x148] sm:$0xf]
    %v164 = vld [vmem:[#allocation2 + $0x14c] sm:$0xf]
    %v165 = vld [vmem:[#allocation2 + $0x150] sm:$0xf]
    %v166 = vld [vmem:[#allocation2 + $0x154] sm:$0xf]
    %v167 = vld [vmem:[#allocation2 + $0x158] sm:$0xf]
    %v168 = vld [vmem:[#allocation2 + $0x15c] sm:$0xf]
    %v169 = vld [vmem:[#allocation2 + $0x160] sm:$0xf]
    %v170 = vld [vmem:[#allocation2 + $0x164] sm:$0xf]
    %v171 = vld [vmem:[#allocation2 + $0x168] sm:$0xf]
    %v172 = vld [vmem:[#allocation2 + $0x16c] sm:$0xf]
    %v173 = vld [vmem:[#allocation2 + $0x170] sm:$0xf]
    %v174 = vld [vmem:[#allocation2 + $0x174] sm:$0xf]
    %v175 = vld [vmem:[#allocation2 + $0x178] sm:$0xf]
    %v176 = vld [vmem:[#allocation2 + $0x17c] sm:$0xf]
    %v177 = vld [vmem:[#allocation2 + $0x180] sm:$0xf]
    %v178 = vld [vmem:[#allocation2 + $0x184] sm:$0xf]
    %v179 = vld [vmem:[%s2] sm:$0x1]
    %v181 = vlaneseq
    %v182 = vshrl.u32 %v181, 7
    %v183 = vsub.s32 0, %v182
    %v184 = vrot.slane %v179, %v183
    %v284 = vunpack.c.l.b16 %v81
    %v285 = vunpack.c.l.b16 %v82
    %v286 = vunpack.c.l.b16 %v83
    %v287 = vunpack.c.l.b16 %v84
    %v288 = vunpack.c.l.b16 %v85
    %v289 = vunpack.c.l.b16 %v86
    %v290 = vunpack.c.l.b16 %v87
    %v291 = vunpack.c.l.b16 %v88
    %v292 = vunpack.c.l.b16 %v89
    %v293 = vunpack.c.l.b16 %v90
    %v294 = vunpack.c.l.b16 %v91
    %v295 = vunpack.c.l.b16 %v92
    %v296 = vunpack.c.l.b16 %v93
    %v297 = vunpack.c.l.b16 %v94
    %v298 = vunpack.c.l.b16 %v95
    %v299 = vunpack.c.l.b16 %v96
    %v300 = vunpack.c.l.b16 %v97
    %v301 = vunpack.c.l.b16 %v98
    %v302 = vunpack.c.l.b16 %v99
    %v303 = vunpack.c.l.b16 %v100
    %v304 = vunpack.c.l.b16 %v101
    %v305 = vunpack.c.l.b16 %v102
    %v306 = vunpack.c.l.b16 %v103
    %v307 = vunpack.c.l.b16 %v104
    %v308 = vunpack.c.l.b16 %v105
    %v309 = vunpack.c.l.b16 %v106
    %v310 = vunpack.c.l.b16 %v107
    %v311 = vunpack.c.l.b16 %v108
    %v312 = vunpack.c.l.b16 %v109
    %v313 = vunpack.c.l.b16 %v110
    %v314 = vunpack.c.l.b16 %v111
    %v315 = vunpack.c.l.b16 %v112
    %v316 = vunpack.c.l.b16 %v113
    %v317 = vunpack.c.l.b16 %v114
    %v318 = vunpack.c.l.b16 %v115
    %v319 = vunpack.c.l.b16 %v116
    %v320 = vunpack.c.l.b16 %v117
    %v321 = vunpack.c.l.b16 %v118
    %v322 = vunpack.c.l.b16 %v119
    %v323 = vunpack.c.l.b16 %v120
    %v324 = vunpack.c.l.b16 %v121
    %v325 = vunpack.c.l.b16 %v122
    %v326 = vunpack.c.l.b16 %v123
    %v327 = vunpack.c.l.b16 %v124
    %v328 = vunpack.c.l.b16 %v125
    %v329 = vunpack.c.l.b16 %v126
    %v330 = vunpack.c.l.b16 %v127
    %v331 = vunpack.c.l.b16 %v128
    %v332 = vunpack.c.l.b16 %v129
    %v333 = vunpack.c.l.b16 %v130
    %v334 = vunpack.c.l.b16 %v131
    %v335 = vunpack.c.l.b16 %v132
    %v336 = vunpack.c.l.b16 %v133
    %v337 = vunpack.c.l.b16 %v134
    %v338 = vunpack.c.l.b16 %v135
    %v339 = vunpack.c.l.b16 %v136
    %v340 = vunpack.c.l.b16 %v137
    %v341 = vunpack.c.l.b16 %v138
    %v342 = vunpack.c.l.b16 %v139
    %v343 = vunpack.c.l.b16 %v140
    %v344 = vunpack.c.l.b16 %v141
    %v345 = vunpack.c.l.b16 %v142
    %v346 = vunpack.c.l.b16 %v143
    %v347 = vunpack.c.l.b16 %v144
    %v348 = vunpack.c.l.b16 %v145
    %v349 = vunpack.c.l.b16 %v146
    %v350 = vunpack.c.l.b16 %v147
    %v351 = vunpack.c.l.b16 %v148
    %v352 = vunpack.c.l.b16 %v149
    %v353 = vunpack.c.l.b16 %v150
    %v354 = vunpack.c.l.b16 %v151
    %v355 = vunpack.c.l.b16 %v152
    %v356 = vunpack.c.l.b16 %v153
    %v357 = vunpack.c.l.b16 %v154
    %v358 = vunpack.c.l.b16 %v155
    %v359 = vunpack.c.l.b16 %v156
    %v360 = vunpack.c.l.b16 %v157
    %v361 = vunpack.c.l.b16 %v158
    %v362 = vunpack.c.l.b16 %v159
    %v363 = vunpack.c.l.b16 %v160
    %v364 = vunpack.c.l.b16 %v161
    %v365 = vunpack.c.l.b16 %v162
    %v366 = vunpack.c.l.b16 %v163
    %v367 = vunpack.c.l.b16 %v164
    %v368 = vunpack.c.l.b16 %v165
    %v369 = vunpack.c.l.b16 %v166
    %v370 = vunpack.c.l.b16 %v167
    %v371 = vunpack.c.l.b16 %v168
    %v372 = vunpack.c.l.b16 %v169
    %v373 = vunpack.c.l.b16 %v170
    %v374 = vunpack.c.l.b16 %v171
    %v375 = vunpack.c.l.b16 %v172
    %v376 = vunpack.c.l.b16 %v173
    %v377 = vunpack.c.l.b16 %v174
    %v378 = vunpack.c.l.b16 %v175
    %v379 = vunpack.c.l.b16 %v176
    %v380 = vunpack.c.l.b16 %v177
    %v381 = vunpack.c.l.b16 %v178
    %v382 = vpack.c.b16 %v285, %v284
    %v383 = vpack.c.b16 %v287, %v286
    %v384 = vpack.c.b16 %v289, %v288
    %v385 = vpack.c.b16 %v291, %v290
    %v386 = vpack.c.b16 %v293, %v292
    %v387 = vpack.c.b16 %v295, %v294
    %v388 = vpack.c.b16 %v297, %v296
    %v389 = vpack.c.b16 %v299, %v298
    %v390 = vpack.c.b16 %v301, %v300
    %v391 = vpack.c.b16 %v303, %v302
    %v392 = vpack.c.b16 %v305, %v304
    %v393 = vpack.c.b16 %v307, %v306
    %v394 = vpack.c.b16 %v309, %v308
    %v395 = vpack.c.b16 %v311, %v310
    %v396 = vpack.c.b16 %v313, %v312
    %v397 = vpack.c.b16 %v315, %v314
    %v398 = vpack.c.b16 %v317, %v316
    %v399 = vpack.c.b16 %v319, %v318
    %v400 = vpack.c.b16 %v321, %v320
    %v401 = vpack.c.b16 %v323, %v322
    %v402 = vpack.c.b16 %v325, %v324
    %v403 = vpack.c.b16 %v327, %v326
    %v404 = vpack.c.b16 %v329, %v328
    %v405 = vpack.c.b16 %v331, %v330
    %v406 = vpack.c.b16 %v333, %v332
    %v407 = vpack.c.b16 %v335, %v334
    %v408 = vpack.c.b16 %v337, %v336
    %v409 = vpack.c.b16 %v339, %v338
    %v410 = vpack.c.b16 %v341, %v340
    %v411 = vpack.c.b16 %v343, %v342
    %v412 = vpack.c.b16 %v345, %v344
    %v413 = vpack.c.b16 %v347, %v346
    %v414 = vpack.c.b16 %v349, %v348
    %v415 = vpack.c.b16 %v351, %v350
    %v416 = vpack.c.b16 %v353, %v352
    %v417 = vpack.c.b16 %v355, %v354
    %v418 = vpack.c.b16 %v357, %v356
    %v419 = vpack.c.b16 %v359, %v358
    %v420 = vpack.c.b16 %v361, %v360
    %v421 = vpack.c.b16 %v363, %v362
    %v422 = vpack.c.b16 %v365, %v364
    %v423 = vpack.c.b16 %v367, %v366
    %v424 = vpack.c.b16 %v369, %v368
    %v425 = vpack.c.b16 %v371, %v370
    %v426 = vpack.c.b16 %v373, %v372
    %v427 = vpack.c.b16 %v375, %v374
    %v428 = vpack.c.b16 %v377, %v376
    %v429 = vpack.c.b16 %v379, %v378
    %v430 = vpack.c.b16 %v381, %v380
    %vm480 = vcmask 130048
    %v482 = vsel %vm480, %v80, 0
    %484 = vmatprep.subr.bf16.mxu0 0
    %485 = vmatpush1.bf16.msra.mxu0 %v382
    %486 = vmatprep.subr.bf16.mxu0 0
    %487 = vmatpush1.bf16.msra.mxu0 %v383
    %488 = vmatprep.subr.bf16.mxu0 0
    %489 = vmatpush1.bf16.msra.mxu0 %v384
    %490 = vmatprep.subr.bf16.mxu0 0
    %491 = vmatpush1.bf16.msra.mxu0 %v385
    %492 = vmatprep.subr.bf16.mxu0 0
    %493 = vmatpush1.bf16.msra.mxu0 %v386
    %494 = vmatprep.subr.bf16.mxu0 0
    %495 = vmatpush1.bf16.msra.mxu0 %v387
    %496 = vmatprep.subr.bf16.mxu0 0
    %497 = vmatpush1.bf16.msra.mxu0 %v388
    %498 = vmatprep.subr.bf16.mxu0 0
    %499 = vmatpush1.bf16.msra.mxu0 %v389
    %500 = vmatprep.subr.bf16.mxu0 0
    %501 = vmatpush1.bf16.msra.mxu0 %v390
    %502 = vmatprep.subr.bf16.mxu0 0
    %503 = vmatpush1.bf16.msra.mxu0 %v391
    %504 = vmatprep.subr.bf16.mxu0 0
    %505 = vmatpush1.bf16.msra.mxu0 %v392
    %506 = vmatprep.subr.bf16.mxu0 0
    %507 = vmatpush1.bf16.msra.mxu0 %v393
    %508 = vmatprep.subr.bf16.mxu0 0
    %509 = vmatpush1.bf16.msra.mxu0 %v394
    %510 = vmatprep.subr.bf16.mxu0 0
    %511 = vmatpush1.bf16.msra.mxu0 %v395
    %512 = vmatprep.subr.bf16.mxu0 0
    %513 = vmatpush1.bf16.msra.mxu0 %v396
    %514 = vmatprep.subr.bf16.mxu0 0
    %515 = vmatpush1.bf16.msra.mxu0 %v397
    %516 = vmatprep.mubr.bf16.mxu0 %v75
    %517 = vmatmul.mubr.bf16.gmra.mrb[0].mxu0 %v74
    %v518 = vpop.f32.mrb[0].mxu0
    %v519 = vadd.f32 %v184, %v518
    %v520 = vpop.f32.mrb[0].mxu0
    %v521 = vpop.f32.mrb[0].mxu0
    %v522 = vadd.f32 %v184, %v521
    %v523 = vpop.f32.mrb[0].mxu0
    %524 = vdwg.mxu0
    %525 = vmatprep.subr.bf16.mxu0 0
    %526 = vmatpush1.bf16.msra.mxu0 %v398
    %527 = vmatprep.subr.bf16.mxu0 0
    %528 = vmatpush1.bf16.msra.mxu0 %v399
    %529 = vmatprep.subr.bf16.mxu0 0
    %530 = vmatpush1.bf16.msra.mxu0 %v400
    %531 = vmatprep.subr.bf16.mxu0 0
    %532 = vmatpush1.bf16.msra.mxu0 %v401
    %533 = vmatprep.subr.bf16.mxu0 0
    %534 = vmatpush1.bf16.msra.mxu0 %v402
    %535 = vmatprep.subr.bf16.mxu0 0
    %536 = vmatpush1.bf16.msra.mxu0 %v403
    %537 = vmatprep.subr.bf16.mxu0 0
    %538 = vmatpush1.bf16.msra.mxu0 %v404
    %539 = vmatprep.subr.bf16.mxu0 0
    %540 = vmatpush1.bf16.msra.mxu0 %v405
    %541 = vmatprep.subr.bf16.mxu0 0
    %542 = vmatpush1.bf16.msra.mxu0 %v406
    %543 = vmatprep.subr.bf16.mxu0 0
    %544 = vmatpush1.bf16.msra.mxu0 %v407
    %545 = vmatprep.subr.bf16.mxu0 0
    %546 = vmatpush1.bf16.msra.mxu0 %v408
    %547 = vmatprep.subr.bf16.mxu0 0
    %548 = vmatpush1.bf16.msra.mxu0 %v409
    %549 = vmatprep.subr.bf16.mxu0 0
    %550 = vmatpush1.bf16.msra.mxu0 %v410
    %551 = vmatprep.subr.bf16.mxu0 0
    %552 = vmatpush1.bf16.msra.mxu0 %v411
    %553 = vmatprep.subr.bf16.mxu0 0
    %554 = vmatpush1.bf16.msra.mxu0 %v412
    %555 = vmatprep.subr.bf16.mxu0 0
    %556 = vmatpush1.bf16.msra.mxu0 %v413
    %557 = vmatprep.mubr.bf16.mxu0 %v77
    %558 = vmatmul.mubr.bf16.gmra.mrb[0].mxu0 %v76
    %v559 = vpop.f32.mrb[0].mxu0
    %v560 = vadd.f32 %v519, %v559
    %v561 = vpop.f32.mrb[0].mxu0
    %v562 = vpop.f32.mrb[0].mxu0
    %v563 = vadd.f32 %v522, %v562
    %v564 = vpop.f32.mrb[0].mxu0
    %565 = vdwg.mxu0
    %566 = vmatprep.subr.bf16.mxu0 0
    %567 = vmatpush1.bf16.msra.mxu0 %v414
    %568 = vmatprep.subr.bf16.mxu0 0
    %569 = vmatpush1.bf16.msra.mxu0 %v415
    %570 = vmatprep.subr.bf16.mxu0 0
    %571 = vmatpush1.bf16.msra.mxu0 %v416
    %572 = vmatprep.subr.bf16.mxu0 0
    %573 = vmatpush1.bf16.msra.mxu0 %v417
    %574 = vmatprep.subr.bf16.mxu0 0
    %575 = vmatpush1.bf16.msra.mxu0 %v418
    %576 = vmatprep.subr.bf16.mxu0 0
    %577 = vmatpush1.bf16.msra.mxu0 %v419
    %578 = vmatprep.subr.bf16.mxu0 0
    %579 = vmatpush1.bf16.msra.mxu0 %v420
    %580 = vmatprep.subr.bf16.mxu0 0
    %581 = vmatpush1.bf16.msra.mxu0 %v421
    %582 = vmatprep.subr.bf16.mxu0 0
    %583 = vmatpush1.bf16.msra.mxu0 %v422
    %584 = vmatprep.subr.bf16.mxu0 0
    %585 = vmatpush1.bf16.msra.mxu0 %v423
    %586 = vmatprep.subr.bf16.mxu0 0
    %587 = vmatpush1.bf16.msra.mxu0 %v424
    %588 = vmatprep.subr.bf16.mxu0 0
    %589 = vmatpush1.bf16.msra.mxu0 %v425
    %590 = vmatprep.subr.bf16.mxu0 0
    %591 = vmatpush1.bf16.msra.mxu0 %v426
    %592 = vmatprep.subr.bf16.mxu0 0
    %593 = vmatpush1.bf16.msra.mxu0 %v427
    %594 = vmatprep.subr.bf16.mxu0 0
    %595 = vmatpush1.bf16.msra.mxu0 %v428
    %596 = vmatprep.subr.bf16.mxu0 0
    %597 = vmatpush1.bf16.msra.mxu0 %v429
    %598 = vmatprep.mubr.bf16.mxu0 %v79
    %599 = vmatmul.mubr.bf16.gmra.mrb[0].mxu0 %v78
    %v600 = vpop.f32.mrb[0].mxu0
    %v601 = vadd.f32 %v560, %v600
    %v602 = vpop.f32.mrb[0].mxu0
    %v603 = vpop.f32.mrb[0].mxu0
    %v604 = vadd.f32 %v563, %v603
    %v605 = vpop.f32.mrb[0].mxu0
    %606 = vdwg.mxu0
    %607 = vmatprep.subr.bf16.mxu0 0
    %608 = vmatpush1.bf16.msra.mxu0 %v430
    %609 = vmatprep.subr.bf16.mxu0 0
    %610 = vmatpush1.bf16.msra.mxu0 0
    %611 = vmatprep.subr.bf16.mxu0 0
    %612 = vmatpush1.bf16.msra.mxu0 0
    %613 = vmatprep.subr.bf16.mxu0 0
    %614 = vmatpush1.bf16.msra.mxu0 0
    %615 = vmatprep.subr.bf16.mxu0 0
    %616 = vmatpush1.bf16.msra.mxu0 0
    %617 = vmatprep.subr.bf16.mxu0 0
    %618 = vmatpush1.bf16.msra.mxu0 0
    %619 = vmatprep.subr.bf16.mxu0 0
    %620 = vmatpush1.bf16.msra.mxu0 0
    %621 = vmatprep.subr.bf16.mxu0 0
    %622 = vmatpush1.bf16.msra.mxu0 0
    %623 = vmatprep.subr.bf16.mxu0 0
    %624 = vmatpush1.bf16.msra.mxu0 0
    %625 = vmatprep.subr.bf16.mxu0 0
    %626 = vmatpush1.bf16.msra.mxu0 0
    %627 = vmatprep.subr.bf16.mxu0 0
    %628 = vmatpush1.bf16.msra.mxu0 0
    %629 = vmatprep.subr.bf16.mxu0 0
    %630 = vmatpush1.bf16.msra.mxu0 0
    %631 = vmatprep.subr.bf16.mxu0 0
    %632 = vmatpush1.bf16.msra.mxu0 0
    %633 = vmatprep.subr.bf16.mxu0 0
    %634 = vmatpush1.bf16.msra.mxu0 0
    %635 = vmatprep.subr.bf16.mxu0 0
    %636 = vmatpush1.bf16.msra.mxu0 0
    %637 = vmatprep.subr.bf16.mxu0 0
    %638 = vmatpush1.bf16.msra.mxu0 0
    %639 = vmatprep.mubr.bf16.mxu0 0
    %640 = vmatmul.mubr.bf16.gmra.mrb[0].mxu0 %v482
    %v641 = vpop.f32.mrb[0].mxu0
    %v642 = vadd.f32 %v601, %v641
    %v643 = vpop.f32.mrb[0].mxu0
    %v644 = vpop.f32.mrb[0].mxu0
    %v645 = vadd.f32 %v604, %v644
    %v646 = vpop.f32.mrb[0].mxu0
    %647 = vdwg.mxu0
    %v648 = vmul.f32 %v642, 0.5
    %v649 = vmul.f32 %v645, 0.5
    %v650 = vtanh.pop %v648
    %v651 = vtanh.pop %v649
    %v652 = vadd.f32 %v650, 1.0
    %v653 = vadd.f32 %v651, 1.0
    %v654 = vmul.f32 %v652, 0.5
    %v655 = vmul.f32 %v653, 0.5
    %v656 = vpack.c.bf16 %v655, %v654
    %v657 = vld [vmem:[%s3] sm:$0xf]
    %v658 = vld [vmem:[%s3 + $0x4] sm:$0xf]
    %v659 = vld [vmem:[%s3 + $0x8] sm:$0xf]
    %v660 = vld [vmem:[%s3 + $0xc] sm:$0xf]
    %v661 = vld [vmem:[%s3 + $0x10] sm:$0xf]
    %v662 = vld [vmem:[%s3 + $0x14] sm:$0xf]
    %v663 = vld [vmem:[%s3 + $0x18] sm:$0xf]
    %v664 = vld [vmem:[%s3 + $0x1c] sm:$0xf]
    %v665 = vld [vmem:[%s3 + $0x20] sm:$0xf]
    %v666 = vld [vmem:[%s3 + $0x24] sm:$0xf]
    %v667 = vld [vmem:[%s3 + $0x28] sm:$0xf]
    %v668 = vld [vmem:[%s3 + $0x2c] sm:$0xf]
    %v669 = vld [vmem:[%s3 + $0x30] sm:$0xf]
    %v670 = vld [vmem:[%s3 + $0x34] sm:$0xf]
    %v671 = vld [vmem:[%s3 + $0x38] sm:$0xf]
    %v672 = vld [vmem:[%s3 + $0x3c] sm:$0xf]
    %v673 = vld [vmem:[%s4] sm:$0x1]
    %v675 = vlaneseq
    %v676 = vshrl.u32 %v675, 7
    %v677 = vsub.s32 0, %v676
    %v678 = vrot.slane %v673, %v677
    %v696 = vunpack.c.l.b16 %v657
    %v697 = vunpack.c.l.b16 %v658
    %v698 = vunpack.c.l.b16 %v659
    %v699 = vunpack.c.l.b16 %v660
    %v700 = vunpack.c.l.b16 %v661
    %v701 = vunpack.c.l.b16 %v662
    %v702 = vunpack.c.l.b16 %v663
    %v703 = vunpack.c.l.b16 %v664
    %v704 = vunpack.c.l.b16 %v665
    %v705 = vunpack.c.l.b16 %v666
    %v706 = vunpack.c.l.b16 %v667
    %v707 = vunpack.c.l.b16 %v668
    %v708 = vunpack.c.l.b16 %v669
    %v709 = vunpack.c.l.b16 %v670
    %v710 = vunpack.c.l.b16 %v671
    %v711 = vunpack.c.l.b16 %v672
    %v712 = vpack.c.b16 %v697, %v696
    %v713 = vpack.c.b16 %v699, %v698
    %v714 = vpack.c.b16 %v701, %v700
    %v715 = vpack.c.b16 %v703, %v702
    %v716 = vpack.c.b16 %v705, %v704
    %v717 = vpack.c.b16 %v707, %v706
    %v718 = vpack.c.b16 %v709, %v708
    %v719 = vpack.c.b16 %v711, %v710
    %728 = vmatprep.subr.bf16.mxu0 0
    %729 = vmatpush1.bf16.msra.mxu0 %v712
    %730 = vmatprep.subr.bf16.mxu0 0
    %731 = vmatpush1.bf16.msra.mxu0 %v713
    %732 = vmatprep.subr.bf16.mxu0 0
    %733 = vmatpush1.bf16.msra.mxu0 %v714
    %734 = vmatprep.subr.bf16.mxu0 0
    %735 = vmatpush1.bf16.msra.mxu0 %v715
    %736 = vmatprep.subr.bf16.mxu0 0
    %737 = vmatpush1.bf16.msra.mxu0 %v716
    %738 = vmatprep.subr.bf16.mxu0 0
    %739 = vmatpush1.bf16.msra.mxu0 %v717
    %740 = vmatprep.subr.bf16.mxu0 0
    %741 = vmatpush1.bf16.msra.mxu0 %v718
    %742 = vmatprep.subr.bf16.mxu0 0
    %743 = vmatpush1.bf16.msra.mxu0 %v719
    %744 = vmatprep.subr.bf16.mxu0 0
    %745 = vmatpush1.bf16.msra.mxu0 0
    %746 = vmatprep.subr.bf16.mxu0 0
    %747 = vmatpush1.bf16.msra.mxu0 0
    %748 = vmatprep.subr.bf16.mxu0 0
    %749 = vmatpush1.bf16.msra.mxu0 0
    %750 = vmatprep.subr.bf16.mxu0 0
    %751 = vmatpush1.bf16.msra.mxu0 0
    %752 = vmatprep.subr.bf16.mxu0 0
    %753 = vmatpush1.bf16.msra.mxu0 0
    %754 = vmatprep.subr.bf16.mxu0 0
    %755 = vmatpush1.bf16.msra.mxu0 0
    %756 = vmatprep.subr.bf16.mxu0 0
    %757 = vmatpush1.bf16.msra.mxu0 0
    %758 = vmatprep.subr.bf16.mxu0 0
    %759 = vmatpush1.bf16.msra.mxu0 0
    %760 = vmatprep.mubr.bf16.mxu0 0
    %761 = vmatmul.mubr.bf16.gmra.mrb[0].mxu0 %v656
    %v762 = vpop.f32.mrb[0].mxu0
    %v763 = vadd.f32 %v678, %v762
    %v764 = vpop.f32.mrb[0].mxu0
    %v765 = vpop.f32.mrb[0].mxu0
    %v766 = vadd.f32 %v678, %v765
    %v767 = vpop.f32.mrb[0].mxu0
    %768 = vdwg.mxu0
    %v769 = vmul.f32 %v763, 0.5
    %v770 = vmul.f32 %v766, 0.5
    %v771 = vtanh.pop %v769
    %v772 = vtanh.pop %v770
    %v773 = vadd.f32 %v771, 1.0
    %v774 = vadd.f32 %v772, 1.0
    %v775 = vmul.f32 %v773, 0.5
    %v776 = vmul.f32 %v774, 0.5
    %v777 = vld [vmem:[%s5] sm:$0xff]
    %v778 = vld [vmem:[%s5 + $0x8] sm:$0xff]
    %v779 = vld [vmem:[%s5 + $0x10] sm:$0xff]
    %v780 = vld [vmem:[%s5 + $0x18] sm:$0xff]
    %v781 = vld [vmem:[%s5 + $0x20] sm:$0xff]
    %v782 = vld [vmem:[%s5 + $0x28] sm:$0xff]
    %v783 = vld [vmem:[%s5 + $0x30] sm:$0xff]
    %v784 = vld [vmem:[%s5 + $0x38] sm:$0xff]
    %v785 = vld [vmem:[%s6] sm:$0x1]
    %v787 = vlaneseq
    %v788 = vshrl.u32 %v787, 7
    %v789 = vsub.s32 0, %v788
    %v790 = vrot.slane %v785, %v789
    %vm792 = vcmask 523264
    %v794 = vsel %vm792, %v775, 0
    %v797 = vsel %vm792, %v776, 0
    %799 = vmatprep.subr.mxu0 0.0
    %800 = vmatpush1.msra.mxu0 %v777
    %801 = vmatprep.subr.mxu0 0.0
    %802 = vmatpush1.msra.mxu0 %v778
    %803 = vmatprep.subr.mxu0 0.0
    %804 = vmatpush1.msra.mxu0 %v779
    %805 = vmatprep.subr.mxu0 0.0
    %806 = vmatpush1.msra.mxu0 %v780
    %807 = vmatprep.subr.mxu0 0.0
    %808 = vmatpush1.msra.mxu0 %v781
    %809 = vmatprep.subr.mxu0 0.0
    %810 = vmatpush1.msra.mxu0 %v782
    %811 = vmatprep.subr.mxu0 0.0
    %812 = vmatpush1.msra.mxu0 %v783
    %813 = vmatprep.subr.mxu0 0.0
    %814 = vmatpush1.msra.mxu0 %v784
    %815 = vmatprep.subr.mxu0 0.0
    %816 = vmatpush1.msra.mxu0 0.0
    %817 = vmatprep.subr.mxu0 0.0
    %818 = vmatpush1.msra.mxu0 0.0
    %819 = vmatprep.subr.mxu0 0.0
    %820 = vmatpush1.msra.mxu0 0.0
    %821 = vmatprep.subr.mxu0 0.0
    %822 = vmatpush1.msra.mxu0 0.0
    %823 = vmatprep.subr.mxu0 0.0
    %824 = vmatpush1.msra.mxu0 0.0
    %825 = vmatprep.subr.mxu0 0.0
    %826 = vmatpush1.msra.mxu0 0.0
    %827 = vmatprep.subr.mxu0 0.0
    %828 = vmatpush1.msra.mxu0 0.0
    %829 = vmatprep.subr.mxu0 0.0
    %830 = vmatpush1.msra.mxu0 0.0
    %831 = vmatprep.subr.mxu0 0.0
    %832 = vmatpush1.msra.mxu0 0.0
    %833 = vmatprep.subr.mxu0 0.0
    %834 = vmatpush1.msra.mxu0 0.0
    %835 = vmatprep.subr.mxu0 0.0
    %836 = vmatpush1.msra.mxu0 0.0
    %837 = vmatprep.subr.mxu0 0.0
    %838 = vmatpush1.msra.mxu0 0.0
    %839 = vmatprep.subr.mxu0 0.0
    %840 = vmatpush1.msra.mxu0 0.0
    %841 = vmatprep.subr.mxu0 0.0
    %842 = vmatpush1.msra.mxu0 0.0
    %843 = vmatprep.subr.mxu0 0.0
    %844 = vmatpush1.msra.mxu0 0.0
    %845 = vmatprep.subr.mxu0 0.0
    %846 = vmatpush1.msra.mxu0 0.0
    %847 = vmatprep.subr.mxu0 0.0
    %848 = vmatpush1.msra.mxu0 0.0
    %849 = vmatprep.subr.mxu0 0.0
    %850 = vmatpush1.msra.mxu0 0.0
    %851 = vmatprep.subr.mxu0 0.0
    %852 = vmatpush1.msra.mxu0 0.0
    %853 = vmatprep.subr.mxu0 0.0
    %854 = vmatpush1.msra.mxu0 0.0
    %855 = vmatprep.subr.mxu0 0.0
    %856 = vmatpush1.msra.mxu0 0.0
    %857 = vmatprep.subr.mxu0 0.0
    %858 = vmatpush1.msra.mxu0 0.0
    %859 = vmatprep.subr.mxu0 0.0
    %860 = vmatpush1.msra.mxu0 0.0
    %861 = vmatprep.subr.mxu0 0.0
    %862 = vmatpush1.msra.mxu0 0.0
    %863 = vmatprep.mubr.f32.mxu0 0.0
    %864 = vmatmul.mubr.f32.gmra.mrb[0].mxu0 %v794
    %v865 = vpop.f32.mrb[0].mxu0
    %v866 = vadd.f32 %v790, %v865
    %v867 = vpop.f32.mrb[0].mxu0
    %868 = vmatprep.mubr.f32.mxu0 0.0
    %869 = vmatmul.mubr.f32.gmra.mrb[0].mxu0 %v797
    %v870 = vpop.f32.mrb[0].mxu0
    %v871 = vadd.f32 %v790, %v870
    %v872 = vpop.f32.mrb[0].mxu0
    %873 = vdwg.mxu0
    %v874 = vmul.f32 %v866, 0.5
    %v875 = vmul.f32 %v871, 0.5
    %v876 = vtanh.pop %v874
    %v877 = vtanh.pop %v875
    %v878 = vadd.f32 %v876, 1.0
    %v879 = vadd.f32 %v877, 1.0
    %v880 = vmul.f32 %v878, 0.5
    %v881 = vmul.f32 %v879, 0.5
    %v882 = vld [vmem:[%s7] sm:$0xff]
    %v883 = vld [vmem:[%s7 + $0x8] sm:$0x3]
    %v884 = vld [vmem:[%s8] sm:$0x1]
    %v886 = vlaneseq
    %v887 = vshrl.u32 %v886, 7
    %v888 = vsub.s32 0, %v887
    %v889 = vrot.slane %v884, %v888
    %vm891 = vcmask 80896
    %v893 = vsel %vm891, %v880, 0
    %v896 = vsel %vm891, %v881, 0
    %vm898 = vcmask 1041408
    %v900 = vsel %vm898, %v883, 0
    %902 = vmatprep.subr.mxu0 0.0
    %903 = vmatpush1.msra.mxu0 %v882
    %904 = vmatprep.subr.mxu0 0.0
    %905 = vmatpush1.msra.mxu0 %v900
    %906 = vmatprep.subr.mxu0 0.0
    %907 = vmatpush1.msra.mxu0 0.0
    %908 = vmatprep.subr.mxu0 0.0
    %909 = vmatpush1.msra.mxu0 0.0
    %910 = vmatprep.subr.mxu0 0.0
    %911 = vmatpush1.msra.mxu0 0.0
    %912 = vmatprep.subr.mxu0 0.0
    %913 = vmatpush1.msra.mxu0 0.0
    %914 = vmatprep.subr.mxu0 0.0
    %915 = vmatpush1.msra.mxu0 0.0
    %916 = vmatprep.subr.mxu0 0.0
    %917 = vmatpush1.msra.mxu0 0.0
    %918 = vmatprep.subr.mxu0 0.0
    %919 = vmatpush1.msra.mxu0 0.0
    %920 = vmatprep.subr.mxu0 0.0
    %921 = vmatpush1.msra.mxu0 0.0
    %922 = vmatprep.subr.mxu0 0.0
    %923 = vmatpush1.msra.mxu0 0.0
    %924 = vmatprep.subr.mxu0 0.0
    %925 = vmatpush1.msra.mxu0 0.0
    %926 = vmatprep.subr.mxu0 0.0
    %927 = vmatpush1.msra.mxu0 0.0
    %928 = vmatprep.subr.mxu0 0.0
    %929 = vmatpush1.msra.mxu0 0.0
    %930 = vmatprep.subr.mxu0 0.0
    %931 = vmatpush1.msra.mxu0 0.0
    %932 = vmatprep.subr.mxu0 0.0
    %933 = vmatpush1.msra.mxu0 0.0
    %934 = vmatprep.subr.mxu0 0.0
    %935 = vmatpush1.msra.mxu0 0.0
    %936 = vmatprep.subr.mxu0 0.0
    %937 = vmatpush1.msra.mxu0 0.0
    %938 = vmatprep.subr.mxu0 0.0
    %939 = vmatpush1.msra.mxu0 0.0
    %940 = vmatprep.subr.mxu0 0.0
    %941 = vmatpush1.msra.mxu0 0.0
    %942 = vmatprep.subr.mxu0 0.0
    %943 = vmatpush1.msra.mxu0 0.0
    %944 = vmatprep.subr.mxu0 0.0
    %945 = vmatpush1.msra.mxu0 0.0
    %946 = vmatprep.subr.mxu0 0.0
    %947 = vmatpush1.msra.mxu0 0.0
    %948 = vmatprep.subr.mxu0 0.0
    %949 = vmatpush1.msra.mxu0 0.0
    %950 = vmatprep.subr.mxu0 0.0
    %951 = vmatpush1.msra.mxu0 0.0
    %952 = vmatprep.subr.mxu0 0.0
    %953 = vmatpush1.msra.mxu0 0.0
    %954 = vmatprep.subr.mxu0 0.0
    %955 = vmatpush1.msra.mxu0 0.0
    %956 = vmatprep.subr.mxu0 0.0
    %957 = vmatpush1.msra.mxu0 0.0
    %958 = vmatprep.subr.mxu0 0.0
    %959 = vmatpush1.msra.mxu0 0.0
    %960 = vmatprep.subr.mxu0 0.0
    %961 = vmatpush1.msra.mxu0 0.0
    %962 = vmatprep.subr.mxu0 0.0
    %963 = vmatpush1.msra.mxu0 0.0
    %964 = vmatprep.subr.mxu0 0.0
    %965 = vmatpush1.msra.mxu0 0.0
    %966 = vmatprep.mubr.f32.mxu0 0.0
    %967 = vmatmul.mubr.f32.gmra.mrb[0].mxu0 %v893
    %v968 = vpop.f32.mrb[0].mxu0
    %v969 = vadd.f32 %v889, %v968
    %v970 = vpop.f32.mrb[0].mxu0
    %971 = vmatprep.mubr.f32.mxu0 0.0
    %972 = vmatmul.mubr.f32.gmra.mrb[0].mxu0 %v896
    %v973 = vpop.f32.mrb[0].mxu0
    %v974 = vadd.f32 %v889, %v973
    %v975 = vpop.f32.mrb[0].mxu0
    %976 = vdwg.mxu0
    %v977 = vmul.f32 %v969, 0.5
    %v978 = vmul.f32 %v974, 0.5
    %v979 = vtanh.pop %v977
    %v980 = vtanh.pop %v978
    %v981 = vadd.f32 %v979, 1.0
    %v982 = vadd.f32 %v980, 1.0
    %v983 = vmul.f32 %v981, 0.5
    %v984 = vmul.f32 %v982, 0.5
    %v985 = vld [vmem:[%s9] sm:$0xff]
    %v986 = vld [vmem:[%s9 + $0x8] sm:$0x3]
    %v987 = vld [vmem:[%s10] sm:$0x1]
    %v989 = vlaneseq
    %v990 = vshrl.u32 %v989, 7
    %v991 = vsub.s32 0, %v990
    %v992 = vrot.slane %v987, %v991
    %v995 = vsel %vm891, %v983, 0
    %v998 = vsel %vm891, %v984, 0
    %v1001 = vsel %vm898, %v986, 0
    %1003 = vmatprep.subr.mxu0 0.0
    %1004 = vmatpush1.msra.mxu0 %v985
    %1005 = vmatprep.subr.mxu0 0.0
    %1006 = vmatpush1.msra.mxu0 %v1001
    %1007 = vmatprep.subr.mxu0 0.0
    %1008 = vmatpush1.msra.mxu0 0.0
    %1009 = vmatprep.subr.mxu0 0.0
    %1010 = vmatpush1.msra.mxu0 0.0
    %1011 = vmatprep.subr.mxu0 0.0
    %1012 = vmatpush1.msra.mxu0 0.0
    %1013 = vmatprep.subr.mxu0 0.0
    %1014 = vmatpush1.msra.mxu0 0.0
    %1015 = vmatprep.subr.mxu0 0.0
    %1016 = vmatpush1.msra.mxu0 0.0
    %1017 = vmatprep.subr.mxu0 0.0
    %1018 = vmatpush1.msra.mxu0 0.0
    %1019 = vmatprep.subr.mxu0 0.0
    %1020 = vmatpush1.msra.mxu0 0.0
    %1021 = vmatprep.subr.mxu0 0.0
    %1022 = vmatpush1.msra.mxu0 0.0
    %1023 = vmatprep.subr.mxu0 0.0
    %1024 = vmatpush1.msra.mxu0 0.0
    %1025 = vmatprep.subr.mxu0 0.0
    %1026 = vmatpush1.msra.mxu0 0.0
    %1027 = vmatprep.subr.mxu0 0.0
    %1028 = vmatpush1.msra.mxu0 0.0
    %1029 = vmatprep.subr.mxu0 0.0
    %1030 = vmatpush1.msra.mxu0 0.0
    %1031 = vmatprep.subr.mxu0 0.0
    %1032 = vmatpush1.msra.mxu0 0.0
    %1033 = vmatprep.subr.mxu0 0.0
    %1034 = vmatpush1.msra.mxu0 0.0
    %1035 = vmatprep.subr.mxu0 0.0
    %1036 = vmatpush1.msra.mxu0 0.0
    %1037 = vmatprep.subr.mxu0 0.0
    %1038 = vmatpush1.msra.mxu0 0.0
    %1039 = vmatprep.subr.mxu0 0.0
    %1040 = vmatpush1.msra.mxu0 0.0
    %1041 = vmatprep.subr.mxu0 0.0
    %1042 = vmatpush1.msra.mxu0 0.0
    %1043 = vmatprep.subr.mxu0 0.0
    %1044 = vmatpush1.msra.mxu0 0.0
    %1045 = vmatprep.subr.mxu0 0.0
    %1046 = vmatpush1.msra.mxu0 0.0
    %1047 = vmatprep.subr.mxu0 0.0
    %1048 = vmatpush1.msra.mxu0 0.0
    %1049 = vmatprep.subr.mxu0 0.0
    %1050 = vmatpush1.msra.mxu0 0.0
    %1051 = vmatprep.subr.mxu0 0.0
    %1052 = vmatpush1.msra.mxu0 0.0
    %1053 = vmatprep.subr.mxu0 0.0
    %1054 = vmatpush1.msra.mxu0 0.0
    %1055 = vmatprep.subr.mxu0 0.0
    %1056 = vmatpush1.msra.mxu0 0.0
    %1057 = vmatprep.subr.mxu0 0.0
    %1058 = vmatpush1.msra.mxu0 0.0
    %1059 = vmatprep.subr.mxu0 0.0
    %1060 = vmatpush1.msra.mxu0 0.0
    %1061 = vmatprep.subr.mxu0 0.0
    %1062 = vmatpush1.msra.mxu0 0.0
    %1063 = vmatprep.subr.mxu0 0.0
    %1064 = vmatpush1.msra.mxu0 0.0
    %1065 = vmatprep.subr.mxu0 0.0
    %1066 = vmatpush1.msra.mxu0 0.0
    %1067 = vmatprep.mubr.f32.mxu0 0.0
    %1068 = vmatmul.mubr.f32.gmra.mrb[0].mxu0 %v995
    %v1069 = vpop.f32.mrb[0].mxu0
    %v1070 = vadd.f32 %v992, %v1069
    %v1071 = vpop.f32.mrb[0].mxu0
    %1072 = vmatprep.mubr.f32.mxu0 0.0
    %1073 = vmatmul.mubr.f32.gmra.mrb[0].mxu0 %v998
    %v1074 = vpop.f32.mrb[0].mxu0
    %v1075 = vadd.f32 %v992, %v1074
    %v1076 = vpop.f32.mrb[0].mxu0
    %1077 = vdwg.mxu0
    %v1078 = vmul.f32 %v1070, 0.5
    %v1079 = vmul.f32 %v1075, 0.5
    %v1080 = vtanh.pop %v1078
    %v1081 = vtanh.pop %v1079
    %v1082 = vadd.f32 %v1080, 1.0
    %v1083 = vadd.f32 %v1081, 1.0
    %v1084 = vmul.f32 %v1082, 0.5
    %v1085 = vmul.f32 %v1083, 0.5
    %v1086 = vld [vmem:[%s11] sm:$0xff]
    %v1087 = vld [vmem:[%s11 + $0x8] sm:$0x3]
    %v1088 = vld [vmem:[%s12] sm:$0x1]
    %v1090 = vlaneseq
    %v1091 = vshrl.u32 %v1090, 7
    %v1092 = vsub.s32 0, %v1091
    %v1093 = vrot.slane %v1088, %v1092
    %v1096 = vsel %vm891, %v1084, 0
    %v1099 = vsel %vm891, %v1085, 0
    %v1102 = vsel %vm898, %v1087, 0
    %1104 = vmatprep.subr.mxu0 0.0
    %1105 = vmatpush1.msra.mxu0 %v1086
    %1106 = vmatprep.subr.mxu0 0.0
    %1107 = vmatpush1.msra.mxu0 %v1102
    %1108 = vmatprep.subr.mxu0 0.0
    %1109 = vmatpush1.msra.mxu0 0.0
    %1110 = vmatprep.subr.mxu0 0.0
    %1111 = vmatpush1.msra.mxu0 0.0
    %1112 = vmatprep.subr.mxu0 0.0
    %1113 = vmatpush1.msra.mxu0 0.0
    %1114 = vmatprep.subr.mxu0 0.0
    %1115 = vmatpush1.msra.mxu0 0.0
    %1116 = vmatprep.subr.mxu0 0.0
    %1117 = vmatpush1.msra.mxu0 0.0
    %1118 = vmatprep.subr.mxu0 0.0
    %1119 = vmatpush1.msra.mxu0 0.0
    %1120 = vmatprep.subr.mxu0 0.0
    %1121 = vmatpush1.msra.mxu0 0.0
    %1122 = vmatprep.subr.mxu0 0.0
    %1123 = vmatpush1.msra.mxu0 0.0
    %1124 = vmatprep.subr.mxu0 0.0
    %1125 = vmatpush1.msra.mxu0 0.0
    %1126 = vmatprep.subr.mxu0 0.0
    %1127 = vmatpush1.msra.mxu0 0.0
    %1128 = vmatprep.subr.mxu0 0.0
    %1129 = vmatpush1.msra.mxu0 0.0
    %1130 = vmatprep.subr.mxu0 0.0
    %1131 = vmatpush1.msra.mxu0 0.0
    %1132 = vmatprep.subr.mxu0 0.0
    %1133 = vmatpush1.msra.mxu0 0.0
    %1134 = vmatprep.subr.mxu0 0.0
    %1135 = vmatpush1.msra.mxu0 0.0
    %1136 = vmatprep.subr.mxu0 0.0
    %1137 = vmatpush1.msra.mxu0 0.0
    %1138 = vmatprep.subr.mxu0 0.0
    %1139 = vmatpush1.msra.mxu0 0.0
    %1140 = vmatprep.subr.mxu0 0.0
    %1141 = vmatpush1.msra.mxu0 0.0
    %1142 = vmatprep.subr.mxu0 0.0
    %1143 = vmatpush1.msra.mxu0 0.0
    %1144 = vmatprep.subr.mxu0 0.0
    %1145 = vmatpush1.msra.mxu0 0.0
    %1146 = vmatprep.subr.mxu0 0.0
    %1147 = vmatpush1.msra.mxu0 0.0
    %1148 = vmatprep.subr.mxu0 0.0
    %1149 = vmatpush1.msra.mxu0 0.0
    %1150 = vmatprep.subr.mxu0 0.0
    %1151 = vmatpush1.msra.mxu0 0.0
    %1152 = vmatprep.subr.mxu0 0.0
    %1153 = vmatpush1.msra.mxu0 0.0
    %1154 = vmatprep.subr.mxu0 0.0
    %1155 = vmatpush1.msra.mxu0 0.0
    %1156 = vmatprep.subr.mxu0 0.0
    %1157 = vmatpush1.msra.mxu0 0.0
    %1158 = vmatprep.subr.mxu0 0.0
    %1159 = vmatpush1.msra.mxu0 0.0
    %1160 = vmatprep.subr.mxu0 0.0
    %1161 = vmatpush1.msra.mxu0 0.0
    %1162 = vmatprep.subr.mxu0 0.0
    %1163 = vmatpush1.msra.mxu0 0.0
    %1164 = vmatprep.subr.mxu0 0.0
    %1165 = vmatpush1.msra.mxu0 0.0
    %1166 = vmatprep.subr.mxu0 0.0
    %1167 = vmatpush1.msra.mxu0 0.0
    %1168 = vmatprep.mubr.f32.mxu0 0.0
    %1169 = vmatmul.mubr.f32.gmra.mrb[0].mxu0 %v1096
    %v1170 = vpop.f32.mrb[0].mxu0
    %v1171 = vadd.f32 %v1093, %v1170
    %v1172 = vpop.f32.mrb[0].mxu0
    %1173 = vmatprep.mubr.f32.mxu0 0.0
    %1174 = vmatmul.mubr.f32.gmra.mrb[0].mxu0 %v1099
    %v1175 = vpop.f32.mrb[0].mxu0
    %v1176 = vadd.f32 %v1093, %v1175
    %v1177 = vpop.f32.mrb[0].mxu0
    %1178 = vdwg.mxu0
    %1179 = vmax.xlane.f32.xlu0 %v1171
    %v1180 = vpop.xlane.xlu0 %1179
    %1181 = vmax.xlane.f32.xlu0 %v1176
    %v1182 = vpop.xlane.xlu0 %1181
    %v1183 = vsub.f32 %v1171, %v1180
    %v1184 = vsub.f32 %v1176, %v1182
    %v1185 = vmul.f32 %v1183, 1.442695
    %v1186 = vpow.pop %v1185
    %v1187 = vmul.f32 %v1184, 1.442695
    %v1188 = vpow.pop %v1187
    %1189 = vadd.xlane.f32.xlu0 %v1186
    %v1190 = vpop.xlane.xlu0 %1189
    %1191 = vadd.xlane.f32.xlu0 %v1188
    %v1192 = vpop.xlane.xlu0 %1191
    %v1193 = vlog2.pop %v1190
    %v1194 = vmul.f32 %v1193, 0.6931472
    %v1195 = vlog2.pop %v1192
    %v1196 = vmul.f32 %v1195, 0.6931472
    %v1197 = vsub.f32 %v1183, %v1194
    %v1198 = vsub.f32 %v1184, %v1196
    %v1199 = vpack.c.bf16 %v1198, %v1197
    %v1201 = vunpack.c.l.b16 %v1199
    %v1202 = vunpack.c.h.b16 %v1199
    %v1203 = vpack.c.b16 %v1201, %v1201
    %v1204 = vpack.c.b16 %v1202, %v1202
    %1207 = vst [vmem:[#allocation5] sm:$0xf] %v1203
    %1208 = vst [vmem:[#allocation5 + $0x4] sm:$0xf] %v1204
    // Predicated region
    $region58: #{tpu_custom_call.1} parent=1 // pred_check
      _
    $region59: #{tpu_custom_call.1} parent=1 // pred_check_branch
      %1210 = sbr.rel (0) target = $region61
    $region60: #{tpu_custom_call.1} parent=1 // pred_region
      %s1212 = ssub.s32 128, 64
      %1213 = vsyncadd [#allocation4], %s1212
      %s1214 = sshll.u32 [#allocation5], 4
      %s1215 = int_to_ptr.vmem [resolvable:$true] %s1214
      %1220 = dma.vmem_to_hbm [thread:$0]  %s1215, 64, %s13, [#allocation4], 64, 64, 4
    $region61: #{tpu_custom_call.1} parent=1 // pred_fallthru
      _
    // Predicated region
    $region62: #{tpu_custom_call.1} parent=1 // pred_check
      _
    $region63: #{tpu_custom_call.1} parent=1 // pred_check_branch
      %1222 = sbr.rel (0) target = $region65
    $region64: #{tpu_custom_call.1} parent=1 // pred_region
      %1223 = dma.done [#allocation4], 128
    $region65: #{tpu_custom_call.1} parent=1 // pred_fallthru
      _
    %1224 = vsyncpa [#allocation3], 1
    %1225 = vsyncpa [#allocation4], 1

</llo_original>
